<compile_context>
chip_gen: v6e
topology: v6e:2x2x1
jax: 0.10.0
libtpu: 0.0.40
codegen_flags: <defaults>
</compile_context>

<pallas_src>
import functools

import jax
import jax.numpy as jnp
from jax.experimental import pallas as pl
from jax.experimental.pallas import tpu as pltpu


def _round_up(x, m):
    return (x + m - 1) // m * m


def _hopfield_kernel(beta_ref, thr_ref, x_ref, pt_ref, weff_ref, bp_ref,
                     wfc_ref, bfc_ref, out_ref):
    beta = beta_ref[0, 0]          # SMEM scalar
    thr = thr_ref[0, 0]            # SMEM scalar

    x = x_ref[...]                                               # (TB, D) bf16

    # --- Hopfield association scores (MXU, bf16 in / f32 accumulate) --------
    # pt_ref is pre-transposed to (D, H): lane-dim contraction, no XLU .T
    scores = beta * jnp.dot(x, pt_ref[...],
                            preferred_element_type=jnp.float32)  # (TB, H) f32

    # --- max-shifted softmax (exact division for threshold parity) ----------
    m = jnp.max(scores, axis=-1, keepdims=True)
    e = jnp.exp(scores - m)
    attn = e / jnp.sum(e, axis=-1, keepdims=True)

    # --- sparsity threshold + renormalization (EUP reciprocal is fine here) -
    attn = jnp.where(attn >= thr, attn, 0.0)
    attn = attn * pl.reciprocal(jnp.sum(attn, axis=-1, keepdims=True) + 1e-12,
                                approx=True)

    # --- folded retrieval + projection: attn @ (P @ Wp^T) + bp ---------------
    h = jnp.dot(attn.astype(weff_ref.dtype), weff_ref[...],
                preferred_element_type=jnp.float32) + bp_ref[...]   # (TB, H)

    # --- fc Linear(hidden -> num_classes), lane-padded to 128 ----------------
    out_ref[...] = (jnp.dot(h.astype(wfc_ref.dtype), wfc_ref[...],
                            preferred_element_type=jnp.float32)
                    + bfc_ref[...])                                 # (TB, Cp)


def prepare_params(params):
    """One-time, device-resident weight prep. Hoisted out of the per-call path.

    Returns (prepped_dict, num_classes)."""
    P = params["patterns"]          # (H, D)
    Wp = params["w_proj"]           # (H, D)   torch Linear layout (out, in)
    bp = params["b_proj"]           # (1, H)
    Wfc = params["w_fc"]            # (C, H)
    bfc = params["b_fc"]            # (1, C)

    H, _ = P.shape
    C = Wfc.shape[0]
    C_pad = _round_up(max(C, 128), 128)       # lane-dense output block

    prepped = {
        "p_t": jnp.asarray(P.T, jnp.bfloat16),                        # (D, H)
        "w_eff": jnp.dot(P, Wp.T, preferred_element_type=jnp.float32
                         ).astype(jnp.bfloat16),                      # (H, H)
        "b_proj": jnp.asarray(bp, jnp.float32).reshape(1, H),         # (1, H)
        "w_fc": jnp.zeros((H, C_pad), jnp.bfloat16)
                   .at[:, :C].set(jnp.asarray(Wfc.T, jnp.bfloat16)),  # (H, Cp)
        "b_fc": jnp.zeros((1, C_pad), jnp.float32)
                   .at[:, :C].set(jnp.asarray(bfc, jnp.float32).reshape(1, C)),
    }
    return prepped, C


@functools.partial(jax.jit, static_argnames=("num_classes", "block_b"))
def hybrid_hopfield_forward(x_nchw, prepped, beta, sparsity_threshold, *,
                            num_classes, block_b=512):
    """x_nchw: (B, C, H, W) float32.  Returns logits (B, num_classes) f32."""
    B = x_nchw.shape[0]
    x_flat = x_nchw.reshape(B, -1).astype(jnp.bfloat16)  # nn.Flatten + bf16 cast
    D = x_flat.shape[1]

    p_t, w_eff = prepped["p_t"], prepped["w_eff"]
    bp, w_fc, bfc = prepped["b_proj"], prepped["w_fc"], prepped["b_fc"]
    H = p_t.shape[1]
    C_pad = w_fc.shape[1]

    # Batch tiling: pad to 16 rows (bf16 sublane packing), large tiles to
    # amortize per-step overhead, and >=2 grid steps when the batch permits
    # so the "parallel" axis can shard across v7x's two TensorCores.
    block_b = _round_up(block_b, 16)
    B16 = _round_up(B, 16)
    TB = min(block_b, B16)
    if B16 // TB < 2 and B16 >= 32:
        TB = _round_up(B16 // 2, 16)
    B_pad = _round_up(B, TB)

    if B_pad != B:
        x_flat = jnp.pad(x_flat, ((0, B_pad - B), (0, 0)))

    beta_arr = jnp.asarray(beta, jnp.float32).reshape(1, 1)
    thr_arr = jnp.asarray(sparsity_threshold, jnp.float32).reshape(1, 1)

    smem = functools.partial(pl.BlockSpec,
                             memory_space=pltpu.MemorySpace.SMEM)

    out = pl.pallas_call(
        _hopfield_kernel,
        out_shape=jax.ShapeDtypeStruct((B_pad, C_pad), jnp.float32),
        grid=(B_pad // TB,),
        in_specs=[
            smem((1, 1), lambda i: (0, 0)),                       # beta
            smem((1, 1), lambda i: (0, 0)),                       # threshold
            pl.BlockSpec((TB, D), lambda i: (i, 0)),              # x tile
            pl.BlockSpec((D, H), lambda i: (0, 0)),               # P^T
            pl.BlockSpec((H, H), lambda i: (0, 0)),               # P @ Wp^T
            pl.BlockSpec((1, H), lambda i: (0, 0)),               # bp
            pl.BlockSpec((H, C_pad), lambda i: (0, 0)),           # Wfc^T (padded)
            pl.BlockSpec((1, C_pad), lambda i: (0, 0)),           # bfc (padded)
        ],
        out_specs=pl.BlockSpec((TB, C_pad), lambda i: (i, 0)),
        compiler_params=pltpu.CompilerParams(
            dimension_semantics=("parallel",)),
    )(beta_arr, thr_arr, x_flat, p_t, w_eff, bp, w_fc, bfc)

    return out[:B, :num_classes]


def init_params(key, input_size, hidden_size, num_classes):
    k1, k2, k3, k4, k5 = jax.random.split(key, 5)
    scale_in = 1.0 / jnp.sqrt(jnp.float32(input_size))
    scale_h = 1.0 / jnp.sqrt(jnp.float32(hidden_size))
    return {
        # Hopfield stored patterns: (hidden_size, input_size)
        "patterns": jax.random.normal(k1, (hidden_size, input_size),
                                      jnp.float32) * scale_in,
        # projection Linear(input_size -> hidden_size), torch layout (out, in)
        "w_proj": jax.random.uniform(k2, (hidden_size, input_size), jnp.float32,
                                     -scale_in, scale_in),
        "b_proj": jax.random.uniform(k3, (1, hidden_size), jnp.float32,
                                     -scale_in, scale_in),
        # fc Linear(hidden_size -> num_classes), torch layout (out, in)
        "w_fc": jax.random.uniform(k4, (num_classes, hidden_size), jnp.float32,
                                   -scale_h, scale_h),
        "b_fc": jax.random.uniform(k5, (1, num_classes), jnp.float32,
                                   -scale_h, scale_h),
    }


def _reference_forward(x_nchw, params, beta, thr):
    """Pure-JAX f32 reference matching the assumed torch semantics."""
    B = x_nchw.shape[0]
    xf = x_nchw.reshape(B, -1)
    P, Wp, bp, Wfc, bfc = (params["patterns"], params["w_proj"],
                           params["b_proj"], params["w_fc"], params["b_fc"])
    scores = beta * xf @ P.T
    attn = jax.nn.softmax(scores, axis=-1)
    attn = jnp.where(attn >= thr, attn, 0.0)
    attn = attn / (jnp.sum(attn, axis=-1, keepdims=True) + 1e-12)
    h = attn @ P @ Wp.T + bp
    return h @ Wfc.T + bfc


if __name__ == "__main__":
    # config['model'] equivalents (small synthetic shapes)
    B, C, H, W = 2, 4, 16, 16
    input_size = C * H * W          # 1024
    hidden_size = 32
    num_classes = 10
    beta = 2.0
    sparsity_threshold = 0.01

    key = jax.random.PRNGKey(0)
    kx, kp = jax.random.split(key)
    x = jax.random.normal(kx, (B, C, H, W), jnp.float32)
    params = init_params(kp, input_size, hidden_size, num_classes)

    prepped, n_cls = prepare_params(params)   # one-time weight prep
    logits = hybrid_hopfield_forward(x, prepped, beta, sparsity_threshold,
                                     num_classes=n_cls)
    jax.block_until_ready(logits)

    assert logits.shape == (B, num_classes)
    assert bool(jnp.all(jnp.isfinite(logits)))

    ref = _reference_forward(x, params, beta, sparsity_threshold)
    assert bool(jnp.allclose(logits, ref, atol=5e-2, rtol=0.0)), \
        "kernel output deviates from f32 reference beyond bf16 tolerance"

    print("KERNEL_OK")
</pallas_src>

<mosaic_0001>
module attributes {stable_mosaic.version = 11 : i64} {
  func.func @_hopfield_kernel(%arg0: i32, %arg1: memref<1x1xf32, #tpu.memory_space<smem>>, %arg2: memref<1x1xf32, #tpu.memory_space<smem>>, %arg3: memref<16x1024xbf16, #tpu.memory_space<vmem>>, %arg4: memref<1024x32xbf16, #tpu.memory_space<vmem>>, %arg5: memref<32x32xbf16, #tpu.memory_space<vmem>>, %arg6: memref<1x32xf32, #tpu.memory_space<vmem>>, %arg7: memref<32x128xbf16, #tpu.memory_space<vmem>>, %arg8: memref<1x128xf32, #tpu.memory_space<vmem>>, %arg9: memref<16x128xf32, #tpu.memory_space<vmem>>) attributes {dimension_semantics = [#tpu.dimension_semantics<parallel>], iteration_bounds = array<i64: 1>, scalar_prefetch = 0 : i64, scratch_operands = 0 : i64, tpu.core_type = #tpu.core_type<tc>, window_params = [{transform_indices = @transform_0, window_bounds = array<i64: 1, 1>}, {transform_indices = @transform_1, window_bounds = array<i64: 1, 1>}, {transform_indices = @transform_2, window_bounds = array<i64: 16, 1024>}, {pipeline_mode = #tpu.pipeline_mode<synchronous>, transform_indices = @transform_3, window_bounds = array<i64: 1024, 32>}, {pipeline_mode = #tpu.pipeline_mode<synchronous>, transform_indices = @transform_4, window_bounds = array<i64: 32, 32>}, {pipeline_mode = #tpu.pipeline_mode<synchronous>, transform_indices = @transform_5, window_bounds = array<i64: 1, 32>}, {pipeline_mode = #tpu.pipeline_mode<synchronous>, transform_indices = @transform_6, window_bounds = array<i64: 32, 128>}, {pipeline_mode = #tpu.pipeline_mode<synchronous>, transform_indices = @transform_7, window_bounds = array<i64: 1, 128>}, {transform_indices = @transform_8, window_bounds = array<i64: 16, 128>}]} {
    %c0 = arith.constant 0 : index
    %c0_0 = arith.constant 0 : index
    %0 = memref.load %arg1[%c0, %c0_0] : memref<1x1xf32, #tpu.memory_space<smem>>
    %c0_1 = arith.constant 0 : index
    %c0_2 = arith.constant 0 : index
    %1 = memref.load %arg2[%c0_1, %c0_2] : memref<1x1xf32, #tpu.memory_space<smem>>
    %c0_3 = arith.constant 0 : index
    %c0_4 = arith.constant 0 : index
    %2 = vector.load %arg3[%c0_3, %c0_4] : memref<16x1024xbf16, #tpu.memory_space<vmem>>, vector<16x1024xbf16>
    %c0_5 = arith.constant 0 : index
    %c0_6 = arith.constant 0 : index
    %3 = vector.load %arg4[%c0_5, %c0_6] : memref<1024x32xbf16, #tpu.memory_space<vmem>>, vector<1024x32xbf16>
    %cst = arith.constant dense<0.000000e+00> : vector<16x32xf32>
    %4 = tpu.matmul %2, %3, %cst {dimension_numbers = #tpu.dot_dimension_numbers<[1], [0], [0], [1], [0, 0, 1, 1], [], []>} : vector<16x1024xbf16>, vector<1024x32xbf16>, vector<16x32xf32> -> vector<16x32xf32>
    %5 = vector.broadcast %0 : f32 to vector<16x32xf32>
    %6 = arith.mulf %5, %4 : vector<16x32xf32>
    %cst_7 = arith.constant dense<0xFF800000> : vector<16xf32>
    %7 = vector.multi_reduction <maximumf>, %6, %cst_7 [1] : vector<16x32xf32> to vector<16xf32>
    %8 = vector.shape_cast %7 : vector<16xf32> to vector<16x1xf32>
    %9 = vector.broadcast %8 : vector<16x1xf32> to vector<16x32xf32>
    %10 = arith.subf %6, %9 : vector<16x32xf32>
    %11 = math.exp %10 : vector<16x32xf32>
    %cst_8 = arith.constant dense<0.000000e+00> : vector<16xf32>
    %12 = vector.multi_reduction <add>, %11, %cst_8 [1] : vector<16x32xf32> to vector<16xf32>
    %13 = vector.shape_cast %12 : vector<16xf32> to vector<16x1xf32>
    %14 = vector.broadcast %13 : vector<16x1xf32> to vector<16x32xf32>
    %15 = arith.divf %11, %14 : vector<16x32xf32>
    %16 = vector.broadcast %1 : f32 to vector<16x32xf32>
    %17 = arith.cmpf oge, %15, %16 : vector<16x32xf32>
    %cst_9 = arith.constant 0.000000e+00 : f32
    %18 = vector.broadcast %cst_9 : f32 to vector<16x32xf32>
    %19 = arith.select %17, %15, %18 : vector<16x32xi1>, vector<16x32xf32>
    %cst_10 = arith.constant dense<0.000000e+00> : vector<16xf32>
    %20 = vector.multi_reduction <add>, %19, %cst_10 [1] : vector<16x32xf32> to vector<16xf32>
    %21 = vector.shape_cast %20 : vector<16xf32> to vector<16x1xf32>
    %cst_11 = arith.constant 9.99999996E-13 : f32
    %22 = vector.broadcast %cst_11 : f32 to vector<16x1xf32>
    %23 = arith.addf %21, %22 : vector<16x1xf32>
    %24 = tpu.reciprocal %23 {approx = true} : vector<16x1xf32> -> vector<16x1xf32>
    %25 = vector.broadcast %24 : vector<16x1xf32> to vector<16x32xf32>
    %26 = arith.mulf %19, %25 : vector<16x32xf32>
    %27 = arith.truncf %26 : vector<16x32xf32> to vector<16x32xbf16>
    %c0_12 = arith.constant 0 : index
    %c0_13 = arith.constant 0 : index
    %28 = vector.load %arg5[%c0_12, %c0_13] : memref<32x32xbf16, #tpu.memory_space<vmem>>, vector<32x32xbf16>
    %cst_14 = arith.constant dense<0.000000e+00> : vector<16x32xf32>
    %29 = tpu.matmul %27, %28, %cst_14 {dimension_numbers = #tpu.dot_dimension_numbers<[1], [0], [0], [1], [0, 0, 1, 1], [], []>} : vector<16x32xbf16>, vector<32x32xbf16>, vector<16x32xf32> -> vector<16x32xf32>
    %c0_15 = arith.constant 0 : index
    %c0_16 = arith.constant 0 : index
    %30 = vector.load %arg6[%c0_15, %c0_16] : memref<1x32xf32, #tpu.memory_space<vmem>>, vector<1x32xf32>
    %31 = vector.broadcast %30 : vector<1x32xf32> to vector<16x32xf32>
    %32 = arith.addf %29, %31 : vector<16x32xf32>
    %33 = arith.truncf %32 : vector<16x32xf32> to vector<16x32xbf16>
    %c0_17 = arith.constant 0 : index
    %c0_18 = arith.constant 0 : index
    %34 = vector.load %arg7[%c0_17, %c0_18] : memref<32x128xbf16, #tpu.memory_space<vmem>>, vector<32x128xbf16>
    %cst_19 = arith.constant dense<0.000000e+00> : vector<16x128xf32>
    %35 = tpu.matmul %33, %34, %cst_19 {dimension_numbers = #tpu.dot_dimension_numbers<[1], [0], [0], [1], [0, 0, 1, 1], [], []>} : vector<16x32xbf16>, vector<32x128xbf16>, vector<16x128xf32> -> vector<16x128xf32>
    %c0_20 = arith.constant 0 : index
    %c0_21 = arith.constant 0 : index
    %36 = vector.load %arg8[%c0_20, %c0_21] : memref<1x128xf32, #tpu.memory_space<vmem>>, vector<1x128xf32>
    %37 = vector.broadcast %36 : vector<1x128xf32> to vector<16x128xf32>
    %38 = arith.addf %35, %37 : vector<16x128xf32>
    %c0_22 = arith.constant 0 : index
    %c0_23 = arith.constant 0 : index
    %39 = vector.load %arg9[%c0_22, %c0_23] : memref<16x128xf32, #tpu.memory_space<vmem>>, vector<16x128xf32>
    tpu.vector_store %arg9[%c0_22, %c0_23], %38 {strides = array<i32>} : memref<16x128xf32, #tpu.memory_space<vmem>>, vector<16x128xf32>,
    return
  }
  func.func @transform_0(%arg0: i32) -> (i32, i32) {
    %c0_i32 = arith.constant 0 : i32
    %c0_i32_0 = arith.constant 0 : i32
    %c0_i32_1 = arith.constant 0 : i32
    return %c0_i32, %c0_i32_0 : i32, i32
  }
  func.func @transform_1(%arg0: i32) -> (i32, i32) {
    %c0_i32 = arith.constant 0 : i32
    %c0_i32_0 = arith.constant 0 : i32
    %c0_i32_1 = arith.constant 0 : i32
    return %c0_i32, %c0_i32_0 : i32, i32
  }
  func.func @transform_2(%arg0: i32) -> (i32, i32) {
    %c0_i32 = arith.constant 0 : i32
    %c0_i32_0 = arith.constant 0 : i32
    return %arg0, %c0_i32 : i32, i32
  }
  func.func @transform_3(%arg0: i32) -> (i32, i32) {
    %c0_i32 = arith.constant 0 : i32
    %c0_i32_0 = arith.constant 0 : i32
    %c0_i32_1 = arith.constant 0 : i32
    return %c0_i32, %c0_i32_0 : i32, i32
  }
  func.func @transform_4(%arg0: i32) -> (i32, i32) {
    %c0_i32 = arith.constant 0 : i32
    %c0_i32_0 = arith.constant 0 : i32
    %c0_i32_1 = arith.constant 0 : i32
    return %c0_i32, %c0_i32_0 : i32, i32
  }
  func.func @transform_5(%arg0: i32) -> (i32, i32) {
    %c0_i32 = arith.constant 0 : i32
    %c0_i32_0 = arith.constant 0 : i32
    %c0_i32_1 = arith.constant 0 : i32
    return %c0_i32, %c0_i32_0 : i32, i32
  }
  func.func @transform_6(%arg0: i32) -> (i32, i32) {
    %c0_i32 = arith.constant 0 : i32
    %c0_i32_0 = arith.constant 0 : i32
    %c0_i32_1 = arith.constant 0 : i32
    return %c0_i32, %c0_i32_0 : i32, i32
  }
  func.func @transform_7(%arg0: i32) -> (i32, i32) {
    %c0_i32 = arith.constant 0 : i32
    %c0_i32_0 = arith.constant 0 : i32
    %c0_i32_1 = arith.constant 0 : i32
    return %c0_i32, %c0_i32_0 : i32, i32
  }
  func.func @transform_8(%arg0: i32) -> (i32, i32) {
    %c0_i32 = arith.constant 0 : i32
    %c0_i32_0 = arith.constant 0 : i32
    return %arg0, %c0_i32 : i32, i32
  }
}

</mosaic_0001>

<llo_original>
// kernel: hybrid_hopfield_forward.1
$region0: #{hybrid_hopfield_forward.1}
  #allocation0 [shape = 'u32[]', space=smem, size = 0x4, offset = 0x4, fixed_abs, tag = 'smem constant byte address 0x4 - core index']
  #allocation1 [shape = 'u32[144,128]{1,0:T(1,128)}', space=vmem, size = 0x12000, scoped, tag = 'internal scratch']
  #allocation2 [shape = 'f32[1,1]{1,0:T(1,128)S(6)}', space=smem, size = 0x200, scoped, tag = 'scoped memory for hybrid_hopfield_forward.1']
  #allocation3 [shape = 'f32[1,1]{1,0:T(1,128)S(6)}', space=smem, size = 0x200, scoped, tag = 'scoped memory for hybrid_hopfield_forward.1']
  %s0 = inlined_call_operand.<no memory space> [shape: f32[1,1], index: 0, kind: input, shape index: {}]
  %s1 = inlined_call_operand.<no memory space> [shape: f32[1,1], index: 1, kind: input, shape index: {}]
  %s2 = inlined_call_operand.vmem [shape: bf16[16,1024], index: 2, kind: input, shape index: {}]
  %s3 = inlined_call_operand.vmem [shape: bf16[1024,32], index: 3, kind: input, shape index: {}]
  %s4 = inlined_call_operand.vmem [shape: bf16[32,32], index: 4, kind: input, shape index: {}]
  %s5 = inlined_call_operand.vmem [shape: f32[1,32], index: 5, kind: input, shape index: {}]
  %s6 = inlined_call_operand.vmem [shape: bf16[32,128], index: 6, kind: input, shape index: {}]
  %s7 = inlined_call_operand.vmem [shape: f32[1,128], index: 7, kind: input, shape index: {}]
  %s8 = inlined_call_operand.vmem [shape: f32[16,128], index: 8, kind: output, shape index: {}]
  %s9 = sld [smem:[#allocation0]]
  $region42: #{hybrid_hopfield_forward.1} parent=0
    _
  %s11 = ssub.s32 1, %s9
  %s12 = scalar_select 0, %s11, %s9
  %13 = sst [smem:[#allocation2]] %s0
  %14 = sst [smem:[#allocation3]] %s1
  // Predicated region
  $region2: #{hybrid_hopfield_forward.1} parent=0 // pred_check
    _
  $region3: #{hybrid_hopfield_forward.1} parent=0 // pred_check_branch
    %16 = sbr.rel (0) target = $region5
  $region4: #{hybrid_hopfield_forward.1} parent=0 // pred_region
    _
  $region5: #{hybrid_hopfield_forward.1} parent=0 // pred_fallthru
    _
  // Predicated region
  $region6: #{hybrid_hopfield_forward.1} parent=0 // pred_check
    _
  $region7: #{hybrid_hopfield_forward.1} parent=0 // pred_check_branch
    %18 = sbr.rel (0) target = $region9
  $region8: #{hybrid_hopfield_forward.1} parent=0 // pred_region
    _
  $region9: #{hybrid_hopfield_forward.1} parent=0 // pred_fallthru
    _
  // Predicated region
  $region10: #{hybrid_hopfield_forward.1} parent=0 // pred_check
    _
  $region11: #{hybrid_hopfield_forward.1} parent=0 // pred_check_branch
    %20 = sbr.rel (0) target = $region13
  $region12: #{hybrid_hopfield_forward.1} parent=0 // pred_region
    _
  $region13: #{hybrid_hopfield_forward.1} parent=0 // pred_fallthru
    _
  // Predicated region
  $region14: #{hybrid_hopfield_forward.1} parent=0 // pred_check
    _
  $region15: #{hybrid_hopfield_forward.1} parent=0 // pred_check_branch
    %22 = sbr.rel (0) target = $region17
  $region16: #{hybrid_hopfield_forward.1} parent=0 // pred_region
    _
  $region17: #{hybrid_hopfield_forward.1} parent=0 // pred_fallthru
    _
  // Predicated region
  $region18: #{hybrid_hopfield_forward.1} parent=0 // pred_check
    _
  $region19: #{hybrid_hopfield_forward.1} parent=0 // pred_check_branch
    %24 = sbr.rel (0) target = $region21
  $region20: #{hybrid_hopfield_forward.1} parent=0 // pred_region
    _
  $region21: #{hybrid_hopfield_forward.1} parent=0 // pred_fallthru
    _
  // Predicated region
  $region22: #{hybrid_hopfield_forward.1} parent=0 // pred_check
    _
  $region23: #{hybrid_hopfield_forward.1} parent=0 // pred_check_branch
    %26 = sbr.rel (0) target = $region25
  $region24: #{hybrid_hopfield_forward.1} parent=0 // pred_region
    _
  $region25: #{hybrid_hopfield_forward.1} parent=0 // pred_fallthru
    _
  // Predicated region
  $region26: #{hybrid_hopfield_forward.1} parent=0 // pred_check
    _
  $region27: #{hybrid_hopfield_forward.1} parent=0 // pred_check_branch
    %28 = sbr.rel (0) target = $region29
  $region28: #{hybrid_hopfield_forward.1} parent=0 // pred_region
    _
  $region29: #{hybrid_hopfield_forward.1} parent=0 // pred_fallthru
    _
  // Predicated region
  $region30: #{hybrid_hopfield_forward.1} parent=0 // pred_check
    _
  $region31: #{hybrid_hopfield_forward.1} parent=0 // pred_check_branch
    %30 = sbr.rel (0) target = $region33
  $region32: #{hybrid_hopfield_forward.1} parent=0 // pred_region
    _
  $region33: #{hybrid_hopfield_forward.1} parent=0 // pred_fallthru
    _
  %s32 = sld [smem:[#allocation2]]
  %s33 = sld [smem:[#allocation3]]
  %v34 = vld [vmem:[%s2] sm:$0xff]
  %v35 = vld [vmem:[%s2 + $0x8] sm:$0xff]
  %v36 = vld [vmem:[%s2 + $0x10] sm:$0xff]
  %v37 = vld [vmem:[%s2 + $0x18] sm:$0xff]
  %v38 = vld [vmem:[%s2 + $0x20] sm:$0xff]
  %v39 = vld [vmem:[%s2 + $0x28] sm:$0xff]
  %v40 = vld [vmem:[%s2 + $0x30] sm:$0xff]
  %v41 = vld [vmem:[%s2 + $0x38] sm:$0xff]
  %v42 = vld [vmem:[%s3] sm:$0xf]
  %v43 = vld [vmem:[%s3 + $0x4] sm:$0xf]
  %v44 = vld [vmem:[%s3 + $0x8] sm:$0xf]
  %v45 = vld [vmem:[%s3 + $0xc] sm:$0xf]
  %v46 = vld [vmem:[%s3 + $0x10] sm:$0xf]
  %v47 = vld [vmem:[%s3 + $0x14] sm:$0xf]
  %v48 = vld [vmem:[%s3 + $0x18] sm:$0xf]
  %v49 = vld [vmem:[%s3 + $0x1c] sm:$0xf]
  %v50 = vld [vmem:[%s3 + $0x20] sm:$0xf]
  %v51 = vld [vmem:[%s3 + $0x24] sm:$0xf]
  %v52 = vld [vmem:[%s3 + $0x28] sm:$0xf]
  %v53 = vld [vmem:[%s3 + $0x2c] sm:$0xf]
  %v54 = vld [vmem:[%s3 + $0x30] sm:$0xf]
  %v55 = vld [vmem:[%s3 + $0x34] sm:$0xf]
  %v56 = vld [vmem:[%s3 + $0x38] sm:$0xf]
  %v57 = vld [vmem:[%s3 + $0x3c] sm:$0xf]
  %v58 = vld [vmem:[%s3 + $0x40] sm:$0xf]
  %v59 = vld [vmem:[%s3 + $0x44] sm:$0xf]
  %v60 = vld [vmem:[%s3 + $0x48] sm:$0xf]
  %v61 = vld [vmem:[%s3 + $0x4c] sm:$0xf]
  %v62 = vld [vmem:[%s3 + $0x50] sm:$0xf]
  %v63 = vld [vmem:[%s3 + $0x54] sm:$0xf]
  %v64 = vld [vmem:[%s3 + $0x58] sm:$0xf]
  %v65 = vld [vmem:[%s3 + $0x5c] sm:$0xf]
  %v66 = vld [vmem:[%s3 + $0x60] sm:$0xf]
  %v67 = vld [vmem:[%s3 + $0x64] sm:$0xf]
  %v68 = vld [vmem:[%s3 + $0x68] sm:$0xf]
  %v69 = vld [vmem:[%s3 + $0x6c] sm:$0xf]
  %v70 = vld [vmem:[%s3 + $0x70] sm:$0xf]
  %v71 = vld [vmem:[%s3 + $0x74] sm:$0xf]
  %v72 = vld [vmem:[%s3 + $0x78] sm:$0xf]
  %v73 = vld [vmem:[%s3 + $0x7c] sm:$0xf]
  %v74 = vld [vmem:[%s3 + $0x80] sm:$0xf]
  %v75 = vld [vmem:[%s3 + $0x84] sm:$0xf]
  %v76 = vld [vmem:[%s3 + $0x88] sm:$0xf]
  %v77 = vld [vmem:[%s3 + $0x8c] sm:$0xf]
  %v78 = vld [vmem:[%s3 + $0x90] sm:$0xf]
  %v79 = vld [vmem:[%s3 + $0x94] sm:$0xf]
  %v80 = vld [vmem:[%s3 + $0x98] sm:$0xf]
  %v81 = vld [vmem:[%s3 + $0x9c] sm:$0xf]
  %v82 = vld [vmem:[%s3 + $0xa0] sm:$0xf]
  %v83 = vld [vmem:[%s3 + $0xa4] sm:$0xf]
  %v84 = vld [vmem:[%s3 + $0xa8] sm:$0xf]
  %v85 = vld [vmem:[%s3 + $0xac] sm:$0xf]
  %v86 = vld [vmem:[%s3 + $0xb0] sm:$0xf]
  %v87 = vld [vmem:[%s3 + $0xb4] sm:$0xf]
  %v88 = vld [vmem:[%s3 + $0xb8] sm:$0xf]
  %v89 = vld [vmem:[%s3 + $0xbc] sm:$0xf]
  %v90 = vld [vmem:[%s3 + $0xc0] sm:$0xf]
  %v91 = vld [vmem:[%s3 + $0xc4] sm:$0xf]
  %v92 = vld [vmem:[%s3 + $0xc8] sm:$0xf]
  %v93 = vld [vmem:[%s3 + $0xcc] sm:$0xf]
  %v94 = vld [vmem:[%s3 + $0xd0] sm:$0xf]
  %v95 = vld [vmem:[%s3 + $0xd4] sm:$0xf]
  %v96 = vld [vmem:[%s3 + $0xd8] sm:$0xf]
  %v97 = vld [vmem:[%s3 + $0xdc] sm:$0xf]
  %v98 = vld [vmem:[%s3 + $0xe0] sm:$0xf]
  %v99 = vld [vmem:[%s3 + $0xe4] sm:$0xf]
  %v100 = vld [vmem:[%s3 + $0xe8] sm:$0xf]
  %v101 = vld [vmem:[%s3 + $0xec] sm:$0xf]
  %v102 = vld [vmem:[%s3 + $0xf0] sm:$0xf]
  %v103 = vld [vmem:[%s3 + $0xf4] sm:$0xf]
  %v104 = vld [vmem:[%s3 + $0xf8] sm:$0xf]
  %v105 = vld [vmem:[%s3 + $0xfc] sm:$0xf]
  %v106 = vld [vmem:[%s3 + $0x100] sm:$0xf]
  %v107 = vld [vmem:[%s3 + $0x104] sm:$0xf]
  %v108 = vld [vmem:[%s3 + $0x108] sm:$0xf]
  %v109 = vld [vmem:[%s3 + $0x10c] sm:$0xf]
  %v110 = vld [vmem:[%s3 + $0x110] sm:$0xf]
  %v111 = vld [vmem:[%s3 + $0x114] sm:$0xf]
  %v112 = vld [vmem:[%s3 + $0x118] sm:$0xf]
  %v113 = vld [vmem:[%s3 + $0x11c] sm:$0xf]
  %v114 = vld [vmem:[%s3 + $0x120] sm:$0xf]
  %v115 = vld [vmem:[%s3 + $0x124] sm:$0xf]
  %v116 = vld [vmem:[%s3 + $0x128] sm:$0xf]
  %v117 = vld [vmem:[%s3 + $0x12c] sm:$0xf]
  %v118 = vld [vmem:[%s3 + $0x130] sm:$0xf]
  %v119 = vld [vmem:[%s3 + $0x134] sm:$0xf]
  %v120 = vld [vmem:[%s3 + $0x138] sm:$0xf]
  %v121 = vld [vmem:[%s3 + $0x13c] sm:$0xf]
  %v122 = vld [vmem:[%s3 + $0x140] sm:$0xf]
  %v123 = vld [vmem:[%s3 + $0x144] sm:$0xf]
  %v124 = vld [vmem:[%s3 + $0x148] sm:$0xf]
  %v125 = vld [vmem:[%s3 + $0x14c] sm:$0xf]
  %v126 = vld [vmem:[%s3 + $0x150] sm:$0xf]
  %v127 = vld [vmem:[%s3 + $0x154] sm:$0xf]
  %v128 = vld [vmem:[%s3 + $0x158] sm:$0xf]
  %v129 = vld [vmem:[%s3 + $0x15c] sm:$0xf]
  %v130 = vld [vmem:[%s3 + $0x160] sm:$0xf]
  %v131 = vld [vmem:[%s3 + $0x164] sm:$0xf]
  %v132 = vld [vmem:[%s3 + $0x168] sm:$0xf]
  %v133 = vld [vmem:[%s3 + $0x16c] sm:$0xf]
  %v134 = vld [vmem:[%s3 + $0x170] sm:$0xf]
  %v135 = vld [vmem:[%s3 + $0x174] sm:$0xf]
  %v136 = vld [vmem:[%s3 + $0x178] sm:$0xf]
  %v137 = vld [vmem:[%s3 + $0x17c] sm:$0xf]
  %v138 = vld [vmem:[%s3 + $0x180] sm:$0xf]
  %v139 = vld [vmem:[%s3 + $0x184] sm:$0xf]
  %v140 = vld [vmem:[%s3 + $0x188] sm:$0xf]
  %v141 = vld [vmem:[%s3 + $0x18c] sm:$0xf]
  %v142 = vld [vmem:[%s3 + $0x190] sm:$0xf]
  %v143 = vld [vmem:[%s3 + $0x194] sm:$0xf]
  %v144 = vld [vmem:[%s3 + $0x198] sm:$0xf]
  %v145 = vld [vmem:[%s3 + $0x19c] sm:$0xf]
  %v146 = vld [vmem:[%s3 + $0x1a0] sm:$0xf]
  %v147 = vld [vmem:[%s3 + $0x1a4] sm:$0xf]
  %v148 = vld [vmem:[%s3 + $0x1a8] sm:$0xf]
  %v149 = vld [vmem:[%s3 + $0x1ac] sm:$0xf]
  %v150 = vld [vmem:[%s3 + $0x1b0] sm:$0xf]
  %v151 = vld [vmem:[%s3 + $0x1b4] sm:$0xf]
  %v152 = vld [vmem:[%s3 + $0x1b8] sm:$0xf]
  %v153 = vld [vmem:[%s3 + $0x1bc] sm:$0xf]
  %v154 = vld [vmem:[%s3 + $0x1c0] sm:$0xf]
  %v155 = vld [vmem:[%s3 + $0x1c4] sm:$0xf]
  %v156 = vld [vmem:[%s3 + $0x1c8] sm:$0xf]
  %v157 = vld [vmem:[%s3 + $0x1cc] sm:$0xf]
  %v158 = vld [vmem:[%s3 + $0x1d0] sm:$0xf]
  %v159 = vld [vmem:[%s3 + $0x1d4] sm:$0xf]
  %v160 = vld [vmem:[%s3 + $0x1d8] sm:$0xf]
  %v161 = vld [vmem:[%s3 + $0x1dc] sm:$0xf]
  %v162 = vld [vmem:[%s3 + $0x1e0] sm:$0xf]
  %v163 = vld [vmem:[%s3 + $0x1e4] sm:$0xf]
  %v164 = vld [vmem:[%s3 + $0x1e8] sm:$0xf]
  %v165 = vld [vmem:[%s3 + $0x1ec] sm:$0xf]
  %v166 = vld [vmem:[%s3 + $0x1f0] sm:$0xf]
  %v167 = vld [vmem:[%s3 + $0x1f4] sm:$0xf]
  %v168 = vld [vmem:[%s3 + $0x1f8] sm:$0xf]
  %v169 = vld [vmem:[%s3 + $0x1fc] sm:$0xf]
  %v178 = vunpack.c.l.b16 %v34
  %v179 = vunpack.c.h.b16 %v34
  %v180 = vunpack.c.l.b16 %v35
  %v181 = vunpack.c.h.b16 %v35
  %v182 = vunpack.c.l.b16 %v36
  %v183 = vunpack.c.h.b16 %v36
  %v184 = vunpack.c.l.b16 %v37
  %v185 = vunpack.c.h.b16 %v37
  %v186 = vunpack.c.l.b16 %v38
  %v187 = vunpack.c.h.b16 %v38
  %v188 = vunpack.c.l.b16 %v39
  %v189 = vunpack.c.h.b16 %v39
  %v190 = vunpack.c.l.b16 %v40
  %v191 = vunpack.c.h.b16 %v40
  %v192 = vunpack.c.l.b16 %v41
  %v193 = vunpack.c.h.b16 %v41
  %v194 = vpack.c.b16 %v186, %v178
  %v195 = vpack.c.b16 %v187, %v179
  %v196 = vpack.c.b16 %v188, %v180
  %v197 = vpack.c.b16 %v189, %v181
  %v198 = vpack.c.b16 %v190, %v182
  %v199 = vpack.c.b16 %v191, %v183
  %v200 = vpack.c.b16 %v192, %v184
  %v201 = vpack.c.b16 %v193, %v185
  %v338 = vunpack.c.l.b16 %v42
  %v339 = vunpack.c.l.b16 %v43
  %v340 = vunpack.c.l.b16 %v44
  %v341 = vunpack.c.l.b16 %v45
  %v342 = vunpack.c.l.b16 %v46
  %v343 = vunpack.c.l.b16 %v47
  %v344 = vunpack.c.l.b16 %v48
  %v345 = vunpack.c.l.b16 %v49
  %v346 = vunpack.c.l.b16 %v50
  %v347 = vunpack.c.l.b16 %v51
  %v348 = vunpack.c.l.b16 %v52
  %v349 = vunpack.c.l.b16 %v53
  %v350 = vunpack.c.l.b16 %v54
  %v351 = vunpack.c.l.b16 %v55
  %v352 = vunpack.c.l.b16 %v56
  %v353 = vunpack.c.l.b16 %v57
  %v354 = vunpack.c.l.b16 %v58
  %v355 = vunpack.c.l.b16 %v59
  %v356 = vunpack.c.l.b16 %v60
  %v357 = vunpack.c.l.b16 %v61
  %v358 = vunpack.c.l.b16 %v62
  %v359 = vunpack.c.l.b16 %v63
  %v360 = vunpack.c.l.b16 %v64
  %v361 = vunpack.c.l.b16 %v65
  %v362 = vunpack.c.l.b16 %v66
  %v363 = vunpack.c.l.b16 %v67
  %v364 = vunpack.c.l.b16 %v68
  %v365 = vunpack.c.l.b16 %v69
  %v366 = vunpack.c.l.b16 %v70
  %v367 = vunpack.c.l.b16 %v71
  %v368 = vunpack.c.l.b16 %v72
  %v369 = vunpack.c.l.b16 %v73
  %v370 = vunpack.c.l.b16 %v74
  %v371 = vunpack.c.l.b16 %v75
  %v372 = vunpack.c.l.b16 %v76
  %v373 = vunpack.c.l.b16 %v77
  %v374 = vunpack.c.l.b16 %v78
  %v375 = vunpack.c.l.b16 %v79
  %v376 = vunpack.c.l.b16 %v80
  %v377 = vunpack.c.l.b16 %v81
  %v378 = vunpack.c.l.b16 %v82
  %v379 = vunpack.c.l.b16 %v83
  %v380 = vunpack.c.l.b16 %v84
  %v381 = vunpack.c.l.b16 %v85
  %v382 = vunpack.c.l.b16 %v86
  %v383 = vunpack.c.l.b16 %v87
  %v384 = vunpack.c.l.b16 %v88
  %v385 = vunpack.c.l.b16 %v89
  %v386 = vunpack.c.l.b16 %v90
  %v387 = vunpack.c.l.b16 %v91
  %v388 = vunpack.c.l.b16 %v92
  %v389 = vunpack.c.l.b16 %v93
  %v390 = vunpack.c.l.b16 %v94
  %v391 = vunpack.c.l.b16 %v95
  %v392 = vunpack.c.l.b16 %v96
  %v393 = vunpack.c.l.b16 %v97
  %v394 = vunpack.c.l.b16 %v98
  %v395 = vunpack.c.l.b16 %v99
  %v396 = vunpack.c.l.b16 %v100
  %v397 = vunpack.c.l.b16 %v101
  %v398 = vunpack.c.l.b16 %v102
  %v399 = vunpack.c.l.b16 %v103
  %v400 = vunpack.c.l.b16 %v104
  %v401 = vunpack.c.l.b16 %v105
  %v402 = vunpack.c.l.b16 %v106
  %v403 = vunpack.c.l.b16 %v107
  %v404 = vunpack.c.l.b16 %v108
  %v405 = vunpack.c.l.b16 %v109
  %v406 = vunpack.c.l.b16 %v110
  %v407 = vunpack.c.l.b16 %v111
  %v408 = vunpack.c.l.b16 %v112
  %v409 = vunpack.c.l.b16 %v113
  %v410 = vunpack.c.l.b16 %v114
  %v411 = vunpack.c.l.b16 %v115
  %v412 = vunpack.c.l.b16 %v116
  %v413 = vunpack.c.l.b16 %v117
  %v414 = vunpack.c.l.b16 %v118
  %v415 = vunpack.c.l.b16 %v119
  %v416 = vunpack.c.l.b16 %v120
  %v417 = vunpack.c.l.b16 %v121
  %v418 = vunpack.c.l.b16 %v122
  %v419 = vunpack.c.l.b16 %v123
  %v420 = vunpack.c.l.b16 %v124
  %v421 = vunpack.c.l.b16 %v125
  %v422 = vunpack.c.l.b16 %v126
  %v423 = vunpack.c.l.b16 %v127
  %v424 = vunpack.c.l.b16 %v128
  %v425 = vunpack.c.l.b16 %v129
  %v426 = vunpack.c.l.b16 %v130
  %v427 = vunpack.c.l.b16 %v131
  %v428 = vunpack.c.l.b16 %v132
  %v429 = vunpack.c.l.b16 %v133
  %v430 = vunpack.c.l.b16 %v134
  %v431 = vunpack.c.l.b16 %v135
  %v432 = vunpack.c.l.b16 %v136
  %v433 = vunpack.c.l.b16 %v137
  %v434 = vunpack.c.l.b16 %v138
  %v435 = vunpack.c.l.b16 %v139
  %v436 = vunpack.c.l.b16 %v140
  %v437 = vunpack.c.l.b16 %v141
  %v438 = vunpack.c.l.b16 %v142
  %v439 = vunpack.c.l.b16 %v143
  %v440 = vunpack.c.l.b16 %v144
  %v441 = vunpack.c.l.b16 %v145
  %v442 = vunpack.c.l.b16 %v146
  %v443 = vunpack.c.l.b16 %v147
  %v444 = vunpack.c.l.b16 %v148
  %v445 = vunpack.c.l.b16 %v149
  %v446 = vunpack.c.l.b16 %v150
  %v447 = vunpack.c.l.b16 %v151
  %v448 = vunpack.c.l.b16 %v152
  %v449 = vunpack.c.l.b16 %v153
  %v450 = vunpack.c.l.b16 %v154
  %v451 = vunpack.c.l.b16 %v155
  %v452 = vunpack.c.l.b16 %v156
  %v453 = vunpack.c.l.b16 %v157
  %v454 = vunpack.c.l.b16 %v158
  %v455 = vunpack.c.l.b16 %v159
  %v456 = vunpack.c.l.b16 %v160
  %v457 = vunpack.c.l.b16 %v161
  %v458 = vunpack.c.l.b16 %v162
  %v459 = vunpack.c.l.b16 %v163
  %v460 = vunpack.c.l.b16 %v164
  %v461 = vunpack.c.l.b16 %v165
  %v462 = vunpack.c.l.b16 %v166
  %v463 = vunpack.c.l.b16 %v167
  %v464 = vunpack.c.l.b16 %v168
  %v465 = vunpack.c.l.b16 %v169
  %v466 = vpack.c.b16 %v339, %v338
  %v467 = vpack.c.b16 %v341, %v340
  %v468 = vpack.c.b16 %v343, %v342
  %v469 = vpack.c.b16 %v345, %v344
  %v470 = vpack.c.b16 %v347, %v346
  %v471 = vpack.c.b16 %v349, %v348
  %v472 = vpack.c.b16 %v351, %v350
  %v473 = vpack.c.b16 %v353, %v352
  %v474 = vpack.c.b16 %v355, %v354
  %v475 = vpack.c.b16 %v357, %v356
  %v476 = vpack.c.b16 %v359, %v358
  %v477 = vpack.c.b16 %v361, %v360
  %v478 = vpack.c.b16 %v363, %v362
  %v479 = vpack.c.b16 %v365, %v364
  %v480 = vpack.c.b16 %v367, %v366
  %v481 = vpack.c.b16 %v369, %v368
  %v482 = vpack.c.b16 %v371, %v370
  %v483 = vpack.c.b16 %v373, %v372
  %v484 = vpack.c.b16 %v375, %v374
  %v485 = vpack.c.b16 %v377, %v376
  %v486 = vpack.c.b16 %v379, %v378
  %v487 = vpack.c.b16 %v381, %v380
  %v488 = vpack.c.b16 %v383, %v382
  %v489 = vpack.c.b16 %v385, %v384
  %v490 = vpack.c.b16 %v387, %v386
  %v491 = vpack.c.b16 %v389, %v388
  %v492 = vpack.c.b16 %v391, %v390
  %v493 = vpack.c.b16 %v393, %v392
  %v494 = vpack.c.b16 %v395, %v394
  %v495 = vpack.c.b16 %v397, %v396
  %v496 = vpack.c.b16 %v399, %v398
  %v497 = vpack.c.b16 %v401, %v400
  %v498 = vpack.c.b16 %v403, %v402
  %v499 = vpack.c.b16 %v405, %v404
  %v500 = vpack.c.b16 %v407, %v406
  %v501 = vpack.c.b16 %v409, %v408
  %v502 = vpack.c.b16 %v411, %v410
  %v503 = vpack.c.b16 %v413, %v412
  %v504 = vpack.c.b16 %v415, %v414
  %v505 = vpack.c.b16 %v417, %v416
  %v506 = vpack.c.b16 %v419, %v418
  %v507 = vpack.c.b16 %v421, %v420
  %v508 = vpack.c.b16 %v423, %v422
  %v509 = vpack.c.b16 %v425, %v424
  %v510 = vpack.c.b16 %v427, %v426
  %v511 = vpack.c.b16 %v429, %v428
  %v512 = vpack.c.b16 %v431, %v430
  %v513 = vpack.c.b16 %v433, %v432
  %v514 = vpack.c.b16 %v435, %v434
  %v515 = vpack.c.b16 %v437, %v436
  %v516 = vpack.c.b16 %v439, %v438
  %v517 = vpack.c.b16 %v441, %v440
  %v518 = vpack.c.b16 %v443, %v442
  %v519 = vpack.c.b16 %v445, %v444
  %v520 = vpack.c.b16 %v447, %v446
  %v521 = vpack.c.b16 %v449, %v448
  %v522 = vpack.c.b16 %v451, %v450
  %v523 = vpack.c.b16 %v453, %v452
  %v524 = vpack.c.b16 %v455, %v454
  %v525 = vpack.c.b16 %v457, %v456
  %v526 = vpack.c.b16 %v459, %v458
  %v527 = vpack.c.b16 %v461, %v460
  %v528 = vpack.c.b16 %v463, %v462
  %v529 = vpack.c.b16 %v465, %v464
  %594 = vmatprep.subr.bf16.mxu0 0
  %595 = vmatpush1.bf16.msra.mxu0 %v473
  %596 = vmatprep.subr.bf16.mxu0 0
  %597 = vmatpush1.bf16.msra.mxu0 %v472
  %598 = vmatprep.subr.bf16.mxu0 0
  %599 = vmatpush1.bf16.msra.mxu0 %v471
  %600 = vmatprep.subr.bf16.mxu0 0
  %601 = vmatpush1.bf16.msra.mxu0 %v470
  %602 = vmatprep.subr.bf16.mxu0 0
  %603 = vmatpush1.bf16.msra.mxu0 %v469
  %604 = vmatprep.subr.bf16.mxu0 0
  %605 = vmatpush1.bf16.msra.mxu0 %v468
  %606 = vmatprep.subr.bf16.mxu0 0
  %607 = vmatpush1.bf16.msra.mxu0 %v467
  %608 = vmatprep.subr.bf16.mxu0 0
  %609 = vmatpush1.bf16.msra.mxu0 %v466
  %610 = vmatprep.subr.bf16.mxu0 0
  %611 = vmatpush2.bf16.msra.mxu0 %v481
  %612 = vmatprep.subr.bf16.mxu0 0
  %613 = vmatpush2.bf16.msra.mxu0 %v480
  %614 = vmatprep.subr.bf16.mxu0 0
  %615 = vmatpush2.bf16.msra.mxu0 %v479
  %616 = vmatprep.subr.bf16.mxu0 0
  %617 = vmatpush2.bf16.msra.mxu0 %v478
  %618 = vmatprep.subr.bf16.mxu0 0
  %619 = vmatpush2.bf16.msra.mxu0 %v477
  %620 = vmatprep.subr.bf16.mxu0 0
  %621 = vmatpush2.bf16.msra.mxu0 %v476
  %622 = vmatprep.subr.bf16.mxu0 0
  %623 = vmatpush2.bf16.msra.mxu0 %v475
  %624 = vmatprep.subr.bf16.mxu0 0
  %625 = vmatpush2.bf16.msra.mxu0 %v474
  %626 = vmatprep.mubr.bf16.mxu0 %v195
  %627 = vmatmul.mubr.bf16.gmra.mxu0 %v194
  %v628 = vpop.f32.mrf.mxu0
  %v629 = vadd.f32 0.0, %v628
  %v630 = vpop.f32.mrf.mxu0
  %v631 = vpop.f32.mrf.mxu0
  %v632 = vadd.f32 0.0, %v631
  %v633 = vpop.f32.mrf.mxu0
  %634 = vdwg.mxu0
  %635 = vmatprep.subr.bf16.mxu0 0
  %636 = vmatpush1.bf16.msra.mxu0 %v489
  %637 = vmatprep.subr.bf16.mxu0 0
  %638 = vmatpush1.bf16.msra.mxu0 %v488
  %639 = vmatprep.subr.bf16.mxu0 0
  %640 = vmatpush1.bf16.msra.mxu0 %v487
  %641 = vmatprep.subr.bf16.mxu0 0
  %642 = vmatpush1.bf16.msra.mxu0 %v486
  %643 = vmatprep.subr.bf16.mxu0 0
  %644 = vmatpush1.bf16.msra.mxu0 %v485
  %645 = vmatprep.subr.bf16.mxu0 0
  %646 = vmatpush1.bf16.msra.mxu0 %v484
  %647 = vmatprep.subr.bf16.mxu0 0
  %648 = vmatpush1.bf16.msra.mxu0 %v483
  %649 = vmatprep.subr.bf16.mxu0 0
  %650 = vmatpush1.bf16.msra.mxu0 %v482
  %651 = vmatprep.subr.bf16.mxu0 0
  %652 = vmatpush2.bf16.msra.mxu0 %v497
  %653 = vmatprep.subr.bf16.mxu0 0
  %654 = vmatpush2.bf16.msra.mxu0 %v496
  %655 = vmatprep.subr.bf16.mxu0 0
  %656 = vmatpush2.bf16.msra.mxu0 %v495
  %657 = vmatprep.subr.bf16.mxu0 0
  %658 = vmatpush2.bf16.msra.mxu0 %v494
  %659 = vmatprep.subr.bf16.mxu0 0
  %660 = vmatpush2.bf16.msra.mxu0 %v493
  %661 = vmatprep.subr.bf16.mxu0 0
  %662 = vmatpush2.bf16.msra.mxu0 %v492
  %663 = vmatprep.subr.bf16.mxu0 0
  %664 = vmatpush2.bf16.msra.mxu0 %v491
  %665 = vmatprep.subr.bf16.mxu0 0
  %666 = vmatpush2.bf16.msra.mxu0 %v490
  %667 = vmatprep.mubr.bf16.mxu0 %v197
  %668 = vmatmul.mubr.bf16.gmra.mxu0 %v196
  %v669 = vpop.f32.mrf.mxu0
  %v670 = vadd.f32 %v629, %v669
  %v671 = vpop.f32.mrf.mxu0
  %v672 = vpop.f32.mrf.mxu0
  %v673 = vadd.f32 %v632, %v672
  %v674 = vpop.f32.mrf.mxu0
  %675 = vdwg.mxu0
  %676 = vmatprep.subr.bf16.mxu0 0
  %677 = vmatpush1.bf16.msra.mxu0 %v505
  %678 = vmatprep.subr.bf16.mxu0 0
  %679 = vmatpush1.bf16.msra.mxu0 %v504
  %680 = vmatprep.subr.bf16.mxu0 0
  %681 = vmatpush1.bf16.msra.mxu0 %v503
  %682 = vmatprep.subr.bf16.mxu0 0
  %683 = vmatpush1.bf16.msra.mxu0 %v502
  %684 = vmatprep.subr.bf16.mxu0 0
  %685 = vmatpush1.bf16.msra.mxu0 %v501
  %686 = vmatprep.subr.bf16.mxu0 0
  %687 = vmatpush1.bf16.msra.mxu0 %v500
  %688 = vmatprep.subr.bf16.mxu0 0
  %689 = vmatpush1.bf16.msra.mxu0 %v499
  %690 = vmatprep.subr.bf16.mxu0 0
  %691 = vmatpush1.bf16.msra.mxu0 %v498
  %692 = vmatprep.subr.bf16.mxu0 0
  %693 = vmatpush2.bf16.msra.mxu0 %v513
  %694 = vmatprep.subr.bf16.mxu0 0
  %695 = vmatpush2.bf16.msra.mxu0 %v512
  %696 = vmatprep.subr.bf16.mxu0 0
  %697 = vmatpush2.bf16.msra.mxu0 %v511
  %698 = vmatprep.subr.bf16.mxu0 0
  %699 = vmatpush2.bf16.msra.mxu0 %v510
  %700 = vmatprep.subr.bf16.mxu0 0
  %701 = vmatpush2.bf16.msra.mxu0 %v509
  %702 = vmatprep.subr.bf16.mxu0 0
  %703 = vmatpush2.bf16.msra.mxu0 %v508
  %704 = vmatprep.subr.bf16.mxu0 0
  %705 = vmatpush2.bf16.msra.mxu0 %v507
  %706 = vmatprep.subr.bf16.mxu0 0
  %707 = vmatpush2.bf16.msra.mxu0 %v506
  %708 = vmatprep.mubr.bf16.mxu0 %v199
  %709 = vmatmul.mubr.bf16.gmra.mxu0 %v198
  %v710 = vpop.f32.mrf.mxu0
  %v711 = vadd.f32 %v670, %v710
  %v712 = vpop.f32.mrf.mxu0
  %v713 = vpop.f32.mrf.mxu0
  %v714 = vadd.f32 %v673, %v713
  %v715 = vpop.f32.mrf.mxu0
  %716 = vdwg.mxu0
  %717 = vmatprep.subr.bf16.mxu0 0
  %718 = vmatpush1.bf16.msra.mxu0 %v521
  %719 = vmatprep.subr.bf16.mxu0 0
  %720 = vmatpush1.bf16.msra.mxu0 %v520
  %721 = vmatprep.subr.bf16.mxu0 0
  %722 = vmatpush1.bf16.msra.mxu0 %v519
  %723 = vmatprep.subr.bf16.mxu0 0
  %724 = vmatpush1.bf16.msra.mxu0 %v518
  %725 = vmatprep.subr.bf16.mxu0 0
  %726 = vmatpush1.bf16.msra.mxu0 %v517
  %727 = vmatprep.subr.bf16.mxu0 0
  %728 = vmatpush1.bf16.msra.mxu0 %v516
  %729 = vmatprep.subr.bf16.mxu0 0
  %730 = vmatpush1.bf16.msra.mxu0 %v515
  %731 = vmatprep.subr.bf16.mxu0 0
  %732 = vmatpush1.bf16.msra.mxu0 %v514
  %733 = vmatprep.subr.bf16.mxu0 0
  %734 = vmatpush2.bf16.msra.mxu0 %v529
  %735 = vmatprep.subr.bf16.mxu0 0
  %736 = vmatpush2.bf16.msra.mxu0 %v528
  %737 = vmatprep.subr.bf16.mxu0 0
  %738 = vmatpush2.bf16.msra.mxu0 %v527
  %739 = vmatprep.subr.bf16.mxu0 0
  %740 = vmatpush2.bf16.msra.mxu0 %v526
  %741 = vmatprep.subr.bf16.mxu0 0
  %742 = vmatpush2.bf16.msra.mxu0 %v525
  %743 = vmatprep.subr.bf16.mxu0 0
  %744 = vmatpush2.bf16.msra.mxu0 %v524
  %745 = vmatprep.subr.bf16.mxu0 0
  %746 = vmatpush2.bf16.msra.mxu0 %v523
  %747 = vmatprep.subr.bf16.mxu0 0
  %748 = vmatpush2.bf16.msra.mxu0 %v522
  %749 = vmatprep.mubr.bf16.mxu0 %v201
  %750 = vmatmul.mubr.bf16.gmra.mxu0 %v200
  %v751 = vpop.f32.mrf.mxu0
  %v752 = vadd.f32 %v711, %v751
  %v753 = vpop.f32.mrf.mxu0
  %v754 = vpop.f32.mrf.mxu0
  %v755 = vadd.f32 %v714, %v754
  %v756 = vpop.f32.mrf.mxu0
  %757 = vdwg.mxu0
  %v758 = vstv %s32
  %v759 = vmul.f32 %v758, %v752
  %v760 = vmul.f32 %v758, %v755
  %vm761 = vcmask 261120
  %v762 = vsel %vm761, %v759, -inf
  %763 = vmax.xlane.f32.xlu0 %v762
  %v764 = vpop.xlane.xlu0 %763
  %v765 = vsel %vm761, %v760, -inf
  %766 = vmax.xlane.f32.xlu0 %v765
  %v767 = vpop.xlane.xlu0 %766
  %v768 = vsub.f32 %v759, %v764
  %v769 = vsub.f32 %v760, %v767
  %v770 = vmul.f32 %v768, 1.442695
  %v771 = vpow.pop %v770
  %v772 = vmul.f32 %v769, 1.442695
  %v773 = vpow.pop %v772
  %v774 = vsel %vm761, %v771, 0.0
  %775 = vadd.xlane.f32.xlu0 %v774
  %v776 = vpop.xlane.xlu0 %775
  %v777 = vsel %vm761, %v773, 0.0
  %778 = vadd.xlane.f32.xlu0 %v777
  %v779 = vpop.xlane.xlu0 %778
  %v780 = vrcp.pop %v776
  %v781 = vmul.f32 %v771, %v780
  %v782 = vrcp.pop %v779
  %v783 = vmul.f32 %v773, %v782
  %v784 = vstv %s33
  %vm785 = vcmp.ge.f32.partialorder %v781, %v784
  %vm786 = vcmp.ge.f32.partialorder %v783, %v784
  %v787 = vsel %vm785, %v781, 0.0
  %v788 = vsel %vm786, %v783, 0.0
  %v789 = vsel %vm761, %v787, 0.0
  %790 = vadd.xlane.f32.xlu0 %v789
  %v791 = vpop.xlane.xlu0 %790
  %v792 = vsel %vm761, %v788, 0.0
  %793 = vadd.xlane.f32.xlu0 %v792
  %v794 = vpop.xlane.xlu0 %793
  %v795 = vadd.f32 %v791, 1e-12
  %v796 = vadd.f32 %v794, 1e-12
  %v797 = vrcp.pop %v795
  %v798 = vrcp.pop %v796
  %v799 = vmul.f32 %v787, %v797
  %v800 = vmul.f32 %v788, %v798
  %v801 = vpack.c.bf16 %v800, %v799
  %v802 = vld [vmem:[%s4] sm:$0xf]
  %v803 = vld [vmem:[%s4 + $0x4] sm:$0xf]
  %v804 = vld [vmem:[%s4 + $0x8] sm:$0xf]
  %v805 = vld [vmem:[%s4 + $0xc] sm:$0xf]
  %v806 = vld [vmem:[%s5] sm:$0x1]
  %v808 = vlaneseq
  %v809 = vshrl.u32 %v808, 7
  %v810 = vsub.s32 0, %v809
  %v811 = vrot.slane %v806, %v810
  %v817 = vunpack.c.l.b16 %v802
  %v818 = vunpack.c.l.b16 %v803
  %v819 = vunpack.c.l.b16 %v804
  %v820 = vunpack.c.l.b16 %v805
  %v821 = vpack.c.b16 %v818, %v817
  %v822 = vpack.c.b16 %v820, %v819
  %v826 = vsel %vm761, %v801, 0
  %828 = vmatprep.subr.bf16.mxu0 0
  %829 = vmatpush1.bf16.msra.mxu0 0
  %830 = vmatprep.subr.bf16.mxu0 0
  %831 = vmatpush1.bf16.msra.mxu0 0
  %832 = vmatprep.subr.bf16.mxu0 0
  %833 = vmatpush1.bf16.msra.mxu0 0
  %834 = vmatprep.subr.bf16.mxu0 0
  %835 = vmatpush1.bf16.msra.mxu0 0
  %836 = vmatprep.subr.bf16.mxu0 0
  %837 = vmatpush1.bf16.msra.mxu0 0
  %838 = vmatprep.subr.bf16.mxu0 0
  %839 = vmatpush1.bf16.msra.mxu0 0
  %840 = vmatprep.subr.bf16.mxu0 0
  %841 = vmatpush1.bf16.msra.mxu0 %v822
  %842 = vmatprep.subr.bf16.mxu0 0
  %843 = vmatpush1.bf16.msra.mxu0 %v821
  %844 = vmatprep.subr.bf16.mxu0 0
  %845 = vmatpush2.bf16.msra.mxu0 0
  %846 = vmatprep.subr.bf16.mxu0 0
  %847 = vmatpush2.bf16.msra.mxu0 0
  %848 = vmatprep.subr.bf16.mxu0 0
  %849 = vmatpush2.bf16.msra.mxu0 0
  %850 = vmatprep.subr.bf16.mxu0 0
  %851 = vmatpush2.bf16.msra.mxu0 0
  %852 = vmatprep.subr.bf16.mxu0 0
  %853 = vmatpush2.bf16.msra.mxu0 0
  %854 = vmatprep.subr.bf16.mxu0 0
  %855 = vmatpush2.bf16.msra.mxu0 0
  %856 = vmatprep.subr.bf16.mxu0 0
  %857 = vmatpush2.bf16.msra.mxu0 0
  %858 = vmatprep.subr.bf16.mxu0 0
  %859 = vmatpush2.bf16.msra.mxu0 0
  %860 = vmatprep.mubr.bf16.mxu0 0
  %861 = vmatmul.mubr.bf16.gmra.mxu0 %v826
  %v862 = vpop.f32.mrf.mxu0
  %v863 = vadd.f32 %v811, %v862
  %v864 = vpop.f32.mrf.mxu0
  %v865 = vpop.f32.mrf.mxu0
  %v866 = vadd.f32 %v811, %v865
  %v867 = vpop.f32.mrf.mxu0
  %868 = vdwg.mxu0
  %v869 = vpack.c.bf16 %v866, %v863
  %v870 = vld [vmem:[%s6] sm:$0xf]
  %v871 = vld [vmem:[%s6 + $0x4] sm:$0xf]
  %v872 = vld [vmem:[%s6 + $0x8] sm:$0xf]
  %v873 = vld [vmem:[%s6 + $0xc] sm:$0xf]
  %v874 = vld [vmem:[%s7] sm:$0x1]
  %v876 = vlaneseq
  %v877 = vshrl.u32 %v876, 7
  %v878 = vsub.s32 0, %v877
  %v879 = vrot.slane %v874, %v878
  %v885 = vunpack.c.l.b16 %v870
  %v886 = vunpack.c.l.b16 %v871
  %v887 = vunpack.c.l.b16 %v872
  %v888 = vunpack.c.l.b16 %v873
  %v889 = vpack.c.b16 %v886, %v885
  %v890 = vpack.c.b16 %v888, %v887
  %v894 = vsel %vm761, %v869, 0
  %896 = vmatprep.subr.bf16.mxu0 0
  %897 = vmatpush1.bf16.msra.mxu0 0
  %898 = vmatprep.subr.bf16.mxu0 0
  %899 = vmatpush1.bf16.msra.mxu0 0
  %900 = vmatprep.subr.bf16.mxu0 0
  %901 = vmatpush1.bf16.msra.mxu0 0
  %902 = vmatprep.subr.bf16.mxu0 0
  %903 = vmatpush1.bf16.msra.mxu0 0
  %904 = vmatprep.subr.bf16.mxu0 0
  %905 = vmatpush1.bf16.msra.mxu0 0
  %906 = vmatprep.subr.bf16.mxu0 0
  %907 = vmatpush1.bf16.msra.mxu0 0
  %908 = vmatprep.subr.bf16.mxu0 0
  %909 = vmatpush1.bf16.msra.mxu0 %v890
  %910 = vmatprep.subr.bf16.mxu0 0
  %911 = vmatpush1.bf16.msra.mxu0 %v889
  %912 = vmatprep.subr.bf16.mxu0 0
  %913 = vmatpush2.bf16.msra.mxu0 0
  %914 = vmatprep.subr.bf16.mxu0 0
  %915 = vmatpush2.bf16.msra.mxu0 0
  %916 = vmatprep.subr.bf16.mxu0 0
  %917 = vmatpush2.bf16.msra.mxu0 0
  %918 = vmatprep.subr.bf16.mxu0 0
  %919 = vmatpush2.bf16.msra.mxu0 0
  %920 = vmatprep.subr.bf16.mxu0 0
  %921 = vmatpush2.bf16.msra.mxu0 0
  %922 = vmatprep.subr.bf16.mxu0 0
  %923 = vmatpush2.bf16.msra.mxu0 0
  %924 = vmatprep.subr.bf16.mxu0 0
  %925 = vmatpush2.bf16.msra.mxu0 0
  %926 = vmatprep.subr.bf16.mxu0 0
  %927 = vmatpush2.bf16.msra.mxu0 0
  %928 = vmatprep.mubr.bf16.mxu0 0
  %929 = vmatmul.mubr.bf16.gmra.mxu0 %v894
  %v930 = vpop.f32.mrf.mxu0
  %v931 = vadd.f32 %v879, %v930
  %v932 = vpop.f32.mrf.mxu0
  %v933 = vpop.f32.mrf.mxu0
  %v934 = vadd.f32 %v879, %v933
  %v935 = vpop.f32.mrf.mxu0
  %936 = vdwg.mxu0
  %937 = vst [vmem:[%s8] sm:$0xff] %v931
  %938 = vst [vmem:[%s8 + $0x8] sm:$0xff] %v934
  // Predicated region
  $region34: #{hybrid_hopfield_forward.1} parent=0 // pred_check
    _
  $region35: #{hybrid_hopfield_forward.1} parent=0 // pred_check_branch
    %940 = sbr.rel (0) target = $region37
  $region36: #{hybrid_hopfield_forward.1} parent=0 // pred_region
    _
  $region37: #{hybrid_hopfield_forward.1} parent=0 // pred_fallthru
    _
  // Predicated region
  $region38: #{hybrid_hopfield_forward.1} parent=0 // pred_check
    _
  $region39: #{hybrid_hopfield_forward.1} parent=0 // pred_check_branch
    %942 = sbr.rel (0) target = $region41
  $region40: #{hybrid_hopfield_forward.1} parent=0 // pred_region
    _
  $region41: #{hybrid_hopfield_forward.1} parent=0 // pred_fallthru
    _

</llo_original>
